<compile_context>
chip_gen: v6e
topology: v6e:2x2x1
jax: 0.10.0
libtpu: 0.0.40
codegen_flags: <defaults>
</compile_context>

<pallas_src>
import functools

import jax
import jax.numpy as jnp
from jax.experimental import pallas as pl
from jax.experimental.pallas import tpu as pltpu


def _ce_kernel(x_ref, lab_ref, out_ref, iota_ref, *, ignore_index, hw, tile_p,
               steps_per_chunk, need_lane_mask):
    s = pl.program_id(2)

    @pl.when(s == 0)
    def _():
        # New (n, chunk) output block: zero the resident accumulator row and
        # (re)materialize the class-iota scratch once per chunk.  Doing this at
        # s == 0 (the sequential axis) keeps it correct under megacore splits of
        # the parallel axes.
        out_ref[...] = jnp.zeros_like(out_ref)
        iota_ref[...] = jax.lax.broadcasted_iota(jnp.int32, iota_ref.shape, 0)

    x = x_ref[0]                          # (C, tile_p), native dtype (f32 / bf16)
    lab = lab_ref[0].astype(jnp.int32)    # (1, tile_p)
    class_iota = iota_ref[...]            # (C, tile_p) int32 (hoisted)

    # Numerically stable CE:  loss = log(sum(exp(x - m))) + m - x[label]
    # max / selection stay in the native dtype (exact); exp/log path is f32.
    m = jnp.max(x, axis=0, keepdims=True)                          # (1, tile_p)
    picked = jnp.sum(jnp.where(class_iota == lab, x, 0),
                     axis=0, keepdims=True)                        # (1, tile_p) = x[label]
    sumexp = jnp.sum(jnp.exp((x - m).astype(jnp.float32)),
                     axis=0, keepdims=True)                        # (1, tile_p) f32

    valid = lab != ignore_index                                    # (1, tile_p) bool
    if need_lane_mask:
        # Mask ragged tails and fully-out-of-range (clamped) tiles.
        chunk = pl.program_id(1)
        lane = jax.lax.broadcasted_iota(jnp.int32, (1, tile_p), 1)
        base = (chunk * steps_per_chunk + s) * tile_p
        valid = jnp.logical_and(valid, (base + lane) < hw)

    per_pix = jnp.where(
        valid,
        jnp.log(sumexp) + m.astype(jnp.float32) - picked.astype(jnp.float32),
        0.0)                                                       # (1, tile_p) f32

    out_ref[0, 0] += per_pix


def _round_up(x, m):
    return ((x + m - 1) // m) * m


def _cdiv(a, b):
    return -(-a // b)


def _vmem_physical_bytes():
    try:
        info = pltpu.get_tpu_info()
        for attr in ("vmem_capacity_bytes", "vmem_size_bytes", "vmem_bytes"):
            v = getattr(info, attr, None)
            if v:
                return int(v)
    except Exception:
        pass
    return 64 << 20  # conservative fallback: v7x per-TensorCore VMEM


def _pick_tile_p(hw, n, c, logit_isz, label_isz, physical_vmem):
    # VMEM budget for everything that scales with tile_p: double-buffered logit
    # and label blocks, the int32 class-iota scratch, and the resident f32
    # partial-sum output block.  Target multi-MiB logit blocks so the ~0.35 us
    # per-grid-step overhead is amortized even at v7x HBM rates.
    budget = min(physical_vmem // 3, 40 << 20)
    per_pixel = 2 * c * logit_isz + 4 * c + 2 * label_isz + 2 * 4
    cap = (budget // max(1, per_pixel)) // 128 * 128
    cap = max(128, min(cap, 1 << 18))
    # With N == 1, make sure there are at least two pixel tiles so the outer
    # parallel chunk axis can feed both v7x TensorCores.
    min_tiles = 2 if n == 1 else 1
    tile_p = min(cap, _round_up(_cdiv(hw, min_tiles), 128))
    return max(128, tile_p)


def cross_entropy_loss_pallas(cls_score, label, *, ignore_index=255,
                              loss_weight=1.0, tile_p=None):
    """cls_score: (N, C, H, W) float (f32 or bf16); label: (N, H, W) int.
    Returns the scalar f32 loss."""
    N, C, H, W = cls_score.shape
    HW = H * W
    P = N * HW

    # Metadata-only reshapes — no transpose, no padding, no extra HBM traffic.
    x3 = cls_score.reshape(N, C, HW)

    # Labels keep their native (possibly narrow) dtype; only >32-bit is narrowed.
    # The kernel casts to int32 after the VMEM load.
    if jnp.dtype(label.dtype).itemsize > 4:
        label = label.astype(jnp.int32)
    lab3 = label.reshape(N, 1, HW)

    logit_isz = jnp.dtype(cls_score.dtype).itemsize
    label_isz = jnp.dtype(lab3.dtype).itemsize
    physical_vmem = _vmem_physical_bytes()

    if tile_p is None:
        tile_p = _pick_tile_p(HW, N, C, logit_isz, label_isz, physical_vmem)
    tile_p = max(128, _round_up(int(tile_p), 128))

    total_steps = _cdiv(HW, tile_p)
    n_chunks = 2 if total_steps >= 2 else 1
    spc = _cdiv(total_steps, n_chunks)                 # steps per chunk
    need_lane_mask = (n_chunks * spc * tile_p) != HW

    if n_chunks * spc == total_steps:
        def pix(c, s):
            return c * spc + s
    else:
        # Uneven chunk split: clamp the pixel-tile index; the clamped duplicate
        # tile is fully masked in-kernel (its base offset is >= HW).
        def pix(c, s):
            return jnp.minimum(c * spc + s, total_steps - 1)

    kernel = functools.partial(
        _ce_kernel, ignore_index=int(ignore_index), hw=HW, tile_p=tile_p,
        steps_per_chunk=spc, need_lane_mask=need_lane_mask)

    # Explicit VMEM limit: our footprint plus headroom, below physical capacity
    # (v5e's 16 MiB scoped default would otherwise cramp multi-MiB blocks).
    footprint = (2 * C * tile_p * logit_isz      # double-buffered logit blocks
                 + C * tile_p * 4                # class-iota scratch (int32)
                 + 2 * tile_p * label_isz        # double-buffered label blocks
                 + 2 * tile_p * 4)               # resident f32 partial row
    vmem_limit = int(min(physical_vmem * 9 // 10,
                         max(footprint + (8 << 20), 16 << 20)))

    partials = pl.pallas_call(
        kernel,
        out_shape=jax.ShapeDtypeStruct((N, n_chunks, 1, tile_p), jnp.float32),
        grid_spec=pltpu.PrefetchScalarGridSpec(
            num_scalar_prefetch=0,
            grid=(N, n_chunks, spc),
            in_specs=[
                pl.BlockSpec((1, C, tile_p), lambda n, c, s: (n, 0, pix(c, s))),
                pl.BlockSpec((1, 1, tile_p), lambda n, c, s: (n, 0, pix(c, s))),
            ],
            out_specs=pl.BlockSpec((1, 1, 1, tile_p),
                                   lambda n, c, s: (n, c, 0, 0)),
            scratch_shapes=[pltpu.VMEM((C, tile_p), jnp.int32)],
        ),
        compiler_params=pltpu.CompilerParams(
            dimension_semantics=("parallel", "parallel", "arbitrary"),
            vmem_limit_bytes=vmem_limit),
    )(x3, lab3)

    # Tiny final reduction + mean-over-ALL-pixels + loss_weight (outside the
    # kernel, so the kernel never bakes 1/P in).
    return jnp.sum(partials) * jnp.float32(float(loss_weight) / float(P))


def _reference(cls_score, label, ignore_index=255, loss_weight=1.0):
    # plain-JAX reference of F.cross_entropy(reduction='none', ignore_index) then .mean()
    N, C, H, W = cls_score.shape
    x = jnp.transpose(cls_score, (0, 2, 3, 1)).reshape(-1, C).astype(jnp.float32)
    lab = label.astype(jnp.int32).reshape(-1)
    lse = jax.scipy.special.logsumexp(x, axis=-1)
    safe_lab = jnp.where(lab == ignore_index, 0, lab)
    picked = jnp.take_along_axis(x, safe_lab[:, None], axis=-1)[:, 0]
    per = jnp.where(lab == ignore_index, 0.0, lse - picked)
    return loss_weight * jnp.mean(per)


def _make_inputs(key, n, c, h, w, dtype):
    k1, k2, k3 = jax.random.split(key, 3)
    cls_score = jax.random.normal(k1, (n, c, h, w), dtype=jnp.float32).astype(dtype)
    label = jax.random.randint(k2, (n, h, w), 0, c, dtype=jnp.int32)
    ignore_mask = jax.random.uniform(k3, (n, h, w)) < 0.1
    label = jnp.where(ignore_mask, 255, label)
    return cls_score, label


if __name__ == "__main__":
    key = jax.random.PRNGKey(0)
    keys = jax.random.split(key, 3)

    # 1) Small f32 case (single pixel tile per image, batch-parallel).
    cls_score, label = _make_inputs(keys[0], 2, 4, 16, 16, jnp.float32)
    loss = jax.block_until_ready(
        cross_entropy_loss_pallas(cls_score, label, ignore_index=255, loss_weight=1.0))
    ref = _reference(cls_score, label)
    assert jnp.allclose(loss, ref, rtol=1e-4, atol=1e-5), (loss, ref)

    # 2) N=1 with uneven chunking: exercises the parallel pixel-chunk axis,
    #    ragged tail masking, and the clamped out-of-range tile.
    cls_score, label = _make_inputs(keys[1], 1, 19, 15, 20, jnp.float32)
    loss = jax.block_until_ready(
        cross_entropy_loss_pallas(cls_score, label, ignore_index=255,
                                  loss_weight=0.5, tile_p=128))
    ref = _reference(cls_score, label, loss_weight=0.5)
    assert jnp.allclose(loss, ref, rtol=1e-4, atol=1e-5), (loss, ref)

    # 3) bf16 logits path (max/select in bf16, exp/log in f32).
    cls_score, label = _make_inputs(keys[2], 1, 8, 16, 16, jnp.bfloat16)
    loss = jax.block_until_ready(
        cross_entropy_loss_pallas(cls_score, label, ignore_index=255, loss_weight=1.0))
    ref = _reference(cls_score.astype(jnp.float32), label)
    assert jnp.allclose(loss, ref, rtol=2e-2, atol=2e-2), (loss, ref)

    print("KERNEL_OK")
</pallas_src>

<mosaic_0001>
module attributes {stable_mosaic.version = 11 : i64} {
  func.func @_ce_kernel(%arg0: i32, %arg1: i32, %arg2: i32, %arg3: memref<1x4x256xf32, #tpu.memory_space<vmem>>, %arg4: memref<1x1x256xi32, #tpu.memory_space<vmem>>, %arg5: memref<1x1x1x256xf32, #tpu.memory_space<vmem>>, %arg6: memref<4x256xi32, #tpu.memory_space<vmem>>) attributes {dimension_semantics = [#tpu.dimension_semantics<parallel>, #tpu.dimension_semantics<parallel>, #tpu.dimension_semantics<arbitrary>], iteration_bounds = array<i64: 2, 1, 1>, scalar_prefetch = 0 : i64, scratch_operands = 1 : i64, tpu.core_type = #tpu.core_type<tc>, window_params = [{transform_indices = @transform_0, window_bounds = array<i64: 1, 4, 256>}, {transform_indices = @transform_1, window_bounds = array<i64: 1, 1, 256>}, {transform_indices = @transform_2, window_bounds = array<i64: 1, 1, 1, 256>}]} {
    %c0_i32 = arith.constant 0 : i32
    %0 = arith.cmpi eq, %arg2, %c0_i32 : i32
    %1 = arith.extui %0 : i1 to i32
    %c0_i32_0 = arith.constant 0 : i32
    %2 = arith.cmpi ne, %1, %c0_i32_0 : i32
    scf.if %2 {
      %cst_20 = arith.constant 0.000000e+00 : f32
      %35 = vector.broadcast %cst_20 : f32 to vector<1x1x1x256xf32>
      %c0_21 = arith.constant 0 : index
      %c0_22 = arith.constant 0 : index
      %c0_23 = arith.constant 0 : index
      %c0_24 = arith.constant 0 : index
      %36 = vector.load %arg5[%c0_21, %c0_22, %c0_23, %c0_24] : memref<1x1x1x256xf32, #tpu.memory_space<vmem>>, vector<1x1x1x256xf32>
      tpu.vector_store %arg5[%c0_21, %c0_22, %c0_23, %c0_24], %35 {strides = array<i32>} : memref<1x1x1x256xf32, #tpu.memory_space<vmem>>, vector<1x1x1x256xf32>,
      %37 = tpu.iota {dimensions = array<i32: 0>} : vector<4x256xi32>
      %c0_25 = arith.constant 0 : index
      %c0_26 = arith.constant 0 : index
      %38 = vector.load %arg6[%c0_25, %c0_26] : memref<4x256xi32, #tpu.memory_space<vmem>>, vector<4x256xi32>
      tpu.vector_store %arg6[%c0_25, %c0_26], %37 {strides = array<i32>} : memref<4x256xi32, #tpu.memory_space<vmem>>, vector<4x256xi32>,
    } else {
    }
    %c0 = arith.constant 0 : index
    %c0_1 = arith.constant 0 : index
    %c0_2 = arith.constant 0 : index
    %3 = vector.load %arg3[%c0, %c0_1, %c0_2] : memref<1x4x256xf32, #tpu.memory_space<vmem>>, vector<1x4x256xf32>
    %4 = vector.shape_cast %3 : vector<1x4x256xf32> to vector<4x256xf32>
    %c0_3 = arith.constant 0 : index
    %c0_4 = arith.constant 0 : index
    %c0_5 = arith.constant 0 : index
    %5 = vector.load %arg4[%c0_3, %c0_4, %c0_5] : memref<1x1x256xi32, #tpu.memory_space<vmem>>, vector<1x1x256xi32>
    %6 = vector.shape_cast %5 : vector<1x1x256xi32> to vector<1x256xi32>
    %c0_6 = arith.constant 0 : index
    %c0_7 = arith.constant 0 : index
    %7 = vector.load %arg6[%c0_6, %c0_7] : memref<4x256xi32, #tpu.memory_space<vmem>>, vector<4x256xi32>
    %cst = arith.constant dense<0xFF800000> : vector<256xf32>
    %8 = vector.multi_reduction <maximumf>, %4, %cst [0] : vector<4x256xf32> to vector<256xf32>
    %9 = vector.shape_cast %8 : vector<256xf32> to vector<1x256xf32>
    %10 = vector.broadcast %6 : vector<1x256xi32> to vector<4x256xi32>
    %11 = arith.cmpi eq, %7, %10 : vector<4x256xi32>
    %c0_i32_8 = arith.constant 0 : i32
    %12 = arith.sitofp %c0_i32_8 : i32 to f32
    %13 = vector.broadcast %12 : f32 to vector<4x256xf32>
    %14 = arith.select %11, %4, %13 : vector<4x256xi1>, vector<4x256xf32>
    %cst_9 = arith.constant dense<0.000000e+00> : vector<256xf32>
    %15 = vector.multi_reduction <add>, %14, %cst_9 [0] : vector<4x256xf32> to vector<256xf32>
    %16 = vector.shape_cast %15 : vector<256xf32> to vector<1x256xf32>
    %17 = vector.broadcast %9 : vector<1x256xf32> to vector<4x256xf32>
    %18 = arith.subf %4, %17 : vector<4x256xf32>
    %19 = math.exp %18 : vector<4x256xf32>
    %cst_10 = arith.constant dense<0.000000e+00> : vector<256xf32>
    %20 = vector.multi_reduction <add>, %19, %cst_10 [0] : vector<4x256xf32> to vector<256xf32>
    %21 = vector.shape_cast %20 : vector<256xf32> to vector<1x256xf32>
    %c255_i32 = arith.constant 255 : i32
    %22 = vector.broadcast %c255_i32 : i32 to vector<1x256xi32>
    %23 = arith.cmpi ne, %6, %22 : vector<1x256xi32>
    %24 = math.log %21 : vector<1x256xf32>
    %25 = arith.addf %24, %9 : vector<1x256xf32>
    %26 = arith.subf %25, %16 : vector<1x256xf32>
    %cst_11 = arith.constant 0.000000e+00 : f32
    %27 = vector.broadcast %cst_11 : f32 to vector<1x256xf32>
    %28 = arith.select %23, %26, %27 : vector<1x256xi1>, vector<1x256xf32>
    %c0_12 = arith.constant 0 : index
    %c0_13 = arith.constant 0 : index
    %c0_14 = arith.constant 0 : index
    %c0_15 = arith.constant 0 : index
    %29 = vector.load %arg5[%c0_12, %c0_13, %c0_14, %c0_15] : memref<1x1x1x256xf32, #tpu.memory_space<vmem>>, vector<1x1x1x256xf32>
    %30 = vector.shape_cast %29 : vector<1x1x1x256xf32> to vector<1x256xf32>
    %31 = arith.addf %30, %28 : vector<1x256xf32>
    %c0_16 = arith.constant 0 : index
    %c0_17 = arith.constant 0 : index
    %c0_18 = arith.constant 0 : index
    %c0_19 = arith.constant 0 : index
    %32 = vector.load %arg5[%c0_16, %c0_17, %c0_18, %c0_19] : memref<1x1x1x256xf32, #tpu.memory_space<vmem>>, vector<1x1x1x256xf32>
    %33 = vector.shape_cast %32 : vector<1x1x1x256xf32> to vector<1x256xf32>
    %34 = vector.shape_cast %31 : vector<1x256xf32> to vector<1x1x1x256xf32>
    tpu.vector_store %arg5[%c0_16, %c0_17, %c0_18, %c0_19], %34 {strides = array<i32>} : memref<1x1x1x256xf32, #tpu.memory_space<vmem>>, vector<1x1x1x256xf32>,
    return
  }
  func.func @transform_0(%arg0: i32, %arg1: i32, %arg2: i32) -> (i32, i32, i32) {
    %c1_i32 = arith.constant 1 : i32
    %0 = arith.muli %arg1, %c1_i32 : i32
    %1 = arith.addi %0, %arg2 : i32
    %c0_i32 = arith.constant 0 : i32
    %c0_i32_0 = arith.constant 0 : i32
    return %arg0, %c0_i32, %1 : i32, i32, i32
  }
  func.func @transform_1(%arg0: i32, %arg1: i32, %arg2: i32) -> (i32, i32, i32) {
    %c1_i32 = arith.constant 1 : i32
    %0 = arith.muli %arg1, %c1_i32 : i32
    %1 = arith.addi %0, %arg2 : i32
    %c0_i32 = arith.constant 0 : i32
    %c0_i32_0 = arith.constant 0 : i32
    return %arg0, %c0_i32, %1 : i32, i32, i32
  }
  func.func @transform_2(%arg0: i32, %arg1: i32, %arg2: i32) -> (i32, i32, i32, i32) {
    %c0_i32 = arith.constant 0 : i32
    %c0_i32_0 = arith.constant 0 : i32
    %c0_i32_1 = arith.constant 0 : i32
    return %arg0, %arg1, %c0_i32, %c0_i32_0 : i32, i32, i32, i32
  }
}

</mosaic_0001>

<llo_original>
// kernel: tpu_custom_call.1
$region0: #{tpu_custom_call.1}
  #allocation0 [shape = 'u32[]', space=smem, size = 0x4, offset = 0x4, fixed_abs, tag = 'smem constant byte address 0x4 - core index']
  #allocation1 [shape = 'u32[144,128]{1,0:T(1,128)}', space=vmem, size = 0x12000, scoped, tag = 'internal scratch']
  #allocation2 [shape = 's32[4,256]{1,0:T(4,128)}', space=vmem, size = 0x1000, scoped, tag = 'scratch operand']
  %s0 = inlined_call_operand.hbm [shape: f32[2,4,256], index: 0, kind: input, shape index: {}]
  %s1 = inlined_call_operand.hbm [shape: s32[2,1,256], index: 1, kind: input, shape index: {}]
  %s2 = inlined_call_operand.hbm [shape: f32[2,1,1,256], index: 2, kind: output, shape index: {}]
  %s3 = sld [smem:[#allocation0]]
  $region53: #{tpu_custom_call.1} parent=0
    _
  %s5 = ssub.s32 1, %s3
  %s6 = scalar_select 0, %s5, %s3
  $region1: #{tpu_custom_call.1} parent=0
    #allocation3 [shape = 'u8[8192]{0}', space=vmem, size = 0x2000, scoped, tag = 'input window, operand 0']
    #allocation4 [shape = 's32[2]{0}', space=sflag, size = 0x8, scoped, tag = 'scoped memory for tpu_custom_call.1']
    #allocation5 [shape = 's32[2]{0}', space=sflag, size = 0x8, scoped, tag = 'scoped memory for tpu_custom_call.1']
    #allocation6 [shape = 'u8[2048]{0}', space=vmem, size = 0x800, scoped, tag = 'input window, operand 1']
    #allocation7 [shape = 's32[2]{0}', space=sflag, size = 0x8, scoped, tag = 'scoped memory for tpu_custom_call.1']
    #allocation8 [shape = 'u8[2048]{0}', space=vmem, size = 0x800, scoped, tag = 'output window, operand 0']
    %7 = vsyncpa [#allocation4], 0
    %s8 = scalar_lea.sflag [#allocation4], 1
    %9 = vsyncpa %s8, 0
    %10 = vsyncpa [#allocation7], 0
    %s11 = scalar_lea.sflag [#allocation7], 1
    %12 = vsyncpa %s11, 0
    %13 = vsyncpa [#allocation5], 0
    %s14 = scalar_lea.sflag [#allocation5], 1
    %15 = vsyncpa %s14, 0
    loop: start=0, step=1, limit=4
    $region2: #{tpu_custom_call.1} parent=1 // loop_pre_header
      _
    $region3: #{tpu_custom_call.1} parent=1 // loop_header
      %s17 = sphi 0, %s21
      %p18 = scmp.ge.s32.totalorder %s17, 4
      %s24 = sphi 0, %s43
      %s25 = sphi 0, %s39
      %s26 = sphi 0, %s35
      %s27 = sphi 0, %s24
      %s28 = sphi 0, %s25
      %s29 = sphi 0, %s26
      %s30 = sphi 0, %s27
      %s31 = sphi 0, %s28
      %s32 = sphi 0, %s29
      %s50 = sphi 0, %s52
      %s53 = sphi 0, %s50
      %s54 = sphi 0, %s53
      %s70 = sphi 0, %s54
      %s80 = sphi 0, %s82
      %s83 = sphi 0, %s80
      %s84 = sphi 0, %s83
      %s100 = sphi 0, %s84
      %s108 = sphi 0, %s110
      %s111 = sphi 0, %s108
      %s112 = sphi 0, %s111
      %s128 = sphi 0, %s112
    $region4: #{tpu_custom_call.1} parent=1 // loop_header_branch
      %20 = sbr.rel (%p18) target = $region8
    $region5: #{tpu_custom_call.1} parent=1 // loop_body
      %s22 = ssub.s32 %s17, 1
      %s23 = ssub.s32 %s17, 2
      %s33 = sadd.s32 1, %s26
      %p34 = scmp.ge.s32.totalorder %s33, 1
      %s35 = scalar_select %p34, 0, %s33
      %s36 = sadd.s32 1, %s25
      %s37 = scalar_select %p34, %s36, %s25
      %p38 = scmp.ge.s32.totalorder %s37, 1
      %s39 = scalar_select %p38, 0, %s37
      %s40 = sadd.s32 1, %s24
      %s41 = scalar_select %p38, %s40, %s24
      %p42 = scmp.ge.s32.totalorder %s41, 2
      %s43 = scalar_select %p42, 0, %s41
      %s44 = sadd.s32 %s25, %s26
      %s45 = sadd.s32 %s39, %s35
      %s46 = ssub.s32 %s24, %s43
      %s47 = ssub.s32 %s44, %s45
      %s48 = sor.u32 %s46, %s47
      %p49 = scmp.eq.s32.totalorder %s48, 0
      %s51 = sadd.s32 %s50, 1
      %s52 = scalar_select %p49, %s50, %s51
      %p55 = pneg %p49
      %p56 = scmp.eq.s32.totalorder %s17, 1
      %p57 = por %p55, %p56
      %p58 = scmp.ne.s32.totalorder %s50, %s53
      %p59 = scmp.eq.s32.totalorder %s17, 0
      %p60 = por %p58, %p59
      %p61 = scmp.ne.s32.totalorder %s50, %s53
      %p62 = scmp.eq.s32.totalorder %s22, 1
      %p63 = por %p61, %p62
      %p64 = scmp.ne.s32.totalorder %s53, %s54
      %p65 = scmp.eq.s32.totalorder %s22, 0
      %p66 = por %p64, %p65
      %p67 = scmp.ne.s32.totalorder %s53, %s54
      %p68 = scmp.eq.s32.totalorder %s23, 1
      %p69 = por %p67, %p68
      %p71 = scmp.ne.s32.totalorder %s54, %s70
      %p72 = scmp.eq.s32.totalorder %s23, 0
      %p73 = por %p71, %p72
      %s74 = sadd.s32 %s25, %s26
      %s75 = sadd.s32 %s39, %s35
      %s76 = ssub.s32 %s24, %s43
      %s77 = ssub.s32 %s74, %s75
      %s78 = sor.u32 %s76, %s77
      %p79 = scmp.eq.s32.totalorder %s78, 0
      %s81 = sadd.s32 %s80, 1
      %s82 = scalar_select %p79, %s80, %s81
      %p85 = pneg %p79
      %p86 = scmp.eq.s32.totalorder %s17, 1
      %p87 = por %p85, %p86
      %p88 = scmp.ne.s32.totalorder %s80, %s83
      %p89 = scmp.eq.s32.totalorder %s17, 0
      %p90 = por %p88, %p89
      %p91 = scmp.ne.s32.totalorder %s80, %s83
      %p92 = scmp.eq.s32.totalorder %s22, 1
      %p93 = por %p91, %p92
      %p94 = scmp.ne.s32.totalorder %s83, %s84
      %p95 = scmp.eq.s32.totalorder %s22, 0
      %p96 = por %p94, %p95
      %p97 = scmp.ne.s32.totalorder %s83, %s84
      %p98 = scmp.eq.s32.totalorder %s23, 1
      %p99 = por %p97, %p98
      %p101 = scmp.ne.s32.totalorder %s84, %s100
      %p102 = scmp.eq.s32.totalorder %s23, 0
      %p103 = por %p101, %p102
      %s104 = ssub.s32 %s24, %s43
      %s105 = ssub.s32 %s25, %s39
      %s106 = sor.u32 %s104, %s105
      %p107 = scmp.eq.s32.totalorder %s106, 0
      %s109 = sadd.s32 %s108, 1
      %s110 = scalar_select %p107, %s108, %s109
      %p113 = pneg %p107
      %p114 = scmp.eq.s32.totalorder %s17, 1
      %p115 = por %p113, %p114
      %p116 = scmp.ne.s32.totalorder %s108, %s111
      %p117 = scmp.eq.s32.totalorder %s17, 0
      %p118 = por %p116, %p117
      %p119 = scmp.ne.s32.totalorder %s108, %s111
      %p120 = scmp.eq.s32.totalorder %s22, 1
      %p121 = por %p119, %p120
      %p122 = scmp.ne.s32.totalorder %s111, %s112
      %p123 = scmp.eq.s32.totalorder %s22, 0
      %p124 = por %p122, %p123
      %p125 = scmp.ne.s32.totalorder %s111, %s112
      %p126 = scmp.eq.s32.totalorder %s23, 1
      %p127 = por %p125, %p126
      %p129 = scmp.ne.s32.totalorder %s112, %s128
      %p130 = scmp.eq.s32.totalorder %s23, 0
      %p131 = por %p129, %p130
      %p132 = scmp.le.s32.totalorder 1, %s17
      %p133 = scmp.lt.s32.totalorder %s17, 3
      %p134 = pnand %p132, %p133
      %p135 = pneg %p134
      // Predicated region
      $region9: #{tpu_custom_call.1} parent=5 // pred_check
        _
      $region10: #{tpu_custom_call.1} parent=5 // pred_check_branch
        %137 = sbr.rel (%p134) target = $region12
      $region11: #{tpu_custom_call.1} parent=5 // pred_region
        %s138 = ssub.s32 %s17, 1
      $region12: #{tpu_custom_call.1} parent=5 // pred_fallthru
        _
      %p139 = scmp.lt.s32.totalorder %s17, 2
      // Predicated region
      $region13: #{tpu_custom_call.1} parent=5 // pred_check
        %p140 = pneg %p139
      $region14: #{tpu_custom_call.1} parent=5 // pred_check_branch
        %142 = sbr.rel (%p140) target = $region16
      $region15: #{tpu_custom_call.1} parent=5 // pred_region
        // Predicated region
        $region17: #{tpu_custom_call.1} parent=15 // pred_check
          %p143 = pneg %p60
        $region18: #{tpu_custom_call.1} parent=15 // pred_check_branch
          %145 = sbr.rel (%p143) target = $region20
        $region19: #{tpu_custom_call.1} parent=15 // pred_region
          %s146 = sand.u32 %s50, 1
          %s147 = scalar_lea.sflag [#allocation4], %s146
          %s148 = sand.u32 %s50, 1
          %s149 = smul.addr %s148, 8
          %s150 = scalar_lea.vmem [#allocation3], %s149
          %s151 = sadd.s32 %s25, %s26
          %s152 = smul.u32 2, %s151
          %s154 = ssub.s32 128, 128
          %155 = vsyncadd %s147, %s154
          %s156 = smul.addr %s24, 2
          %s157 = sadd.s32 %s152, %s156
          %s158 = smul.addr %s157, 64
          %s159 = scalar_lea.hbm %s0, %s158
          %s161 = sshll.u32 %s150, 4
          %s162 = int_to_ptr.vmem [resolvable:$true] %s161
          %164 = dma.hbm_to_vmem [thread:$0]  %s159, 128, %s162, %s147
        $region20: #{tpu_custom_call.1} parent=15 // pred_fallthru
          _
        // Predicated region
        $region21: #{tpu_custom_call.1} parent=15 // pred_check
          %p165 = pneg %p90
        $region22: #{tpu_custom_call.1} parent=15 // pred_check_branch
          %167 = sbr.rel (%p165) target = $region24
        $region23: #{tpu_custom_call.1} parent=15 // pred_region
          %s168 = sand.u32 %s80, 1
          %s169 = scalar_lea.sflag [#allocation7], %s168
          %s170 = sand.u32 %s80, 1
          %s171 = smul.addr %s170, 2
          %s172 = scalar_lea.vmem [#allocation6], %s171
          %s173 = sadd.s32 %s25, %s26
          %s174 = smul.u32 2, %s173
          %s176 = ssub.s32 32, 32
          %177 = vsyncadd %s169, %s176
          %s178 = smul.addr %s24, 2
          %s179 = sadd.s32 %s174, %s178
          %s180 = smul.addr %s179, 16
          %s181 = scalar_lea.hbm %s1, %s180
          %s183 = sshll.u32 %s172, 4
          %s184 = int_to_ptr.vmem [resolvable:$true] %s183
          %186 = dma.hbm_to_vmem [thread:$0]  %s181, 32, %s184, %s169
        $region24: #{tpu_custom_call.1} parent=15 // pred_fallthru
          _
      $region16: #{tpu_custom_call.1} parent=5 // pred_fallthru
        _
      %p187 = scmp.le.s32.totalorder 1, %s17
      %p188 = scmp.lt.s32.totalorder %s17, 3
      %p189 = pnand %p187, %p188
      %p190 = pneg %p189
      // Predicated region
      $region25: #{tpu_custom_call.1} parent=5 // pred_check
        _
      $region26: #{tpu_custom_call.1} parent=5 // pred_check_branch
        %192 = sbr.rel (%p189) target = $region28
      $region27: #{tpu_custom_call.1} parent=5 // pred_region
        %s193 = ssub.s32 %s17, 1
        %s194 = sand.u32 %s53, 1
        %s195 = scalar_lea.sflag [#allocation4], %s194
        %s196 = sand.u32 %s53, 1
        %s197 = smul.addr %s196, 8
        %s198 = scalar_lea.vmem [#allocation3], %s197
        // Predicated region
        $region29: #{tpu_custom_call.1} parent=27 // pred_check
          %p199 = pneg %p66
        $region30: #{tpu_custom_call.1} parent=27 // pred_check_branch
          %201 = sbr.rel (%p199) target = $region32
        $region31: #{tpu_custom_call.1} parent=27 // pred_region
          %202 = dma.done %s195, 128
        $region32: #{tpu_custom_call.1} parent=27 // pred_fallthru
          _
        %s203 = sand.u32 %s83, 1
        %s204 = scalar_lea.sflag [#allocation7], %s203
        %s205 = sand.u32 %s83, 1
        %s206 = smul.addr %s205, 2
        %s207 = scalar_lea.vmem [#allocation6], %s206
        // Predicated region
        $region33: #{tpu_custom_call.1} parent=27 // pred_check
          %p208 = pneg %p96
        $region34: #{tpu_custom_call.1} parent=27 // pred_check_branch
          %210 = sbr.rel (%p208) target = $region36
        $region35: #{tpu_custom_call.1} parent=27 // pred_region
          %211 = dma.done %s204, 32
        $region36: #{tpu_custom_call.1} parent=27 // pred_fallthru
          _
        %s212 = sand.u32 %s53, 1
        %s213 = scalar_lea.sflag [#allocation4], %s212
        %s214 = sand.u32 %s53, 1
        %s215 = smul.addr %s214, 8
        %s216 = scalar_lea.vmem [#allocation3], %s215
        %p217 = pneg %p66
        %p218 = pneg %p63
        %s219 = sand.u32 %s83, 1
        %s220 = scalar_lea.sflag [#allocation7], %s219
        %s221 = sand.u32 %s83, 1
        %s222 = smul.addr %s221, 2
        %s223 = scalar_lea.vmem [#allocation6], %s222
        %p224 = pneg %p96
        %p225 = pneg %p93
        %p226 = pneg %p124
        %p227 = pneg %p121
        %s228 = sand.u32 %s111, 1
        %s229 = scalar_lea.sflag [#allocation5], %s228
        %s230 = sand.u32 %s111, 1
        %s231 = smul.addr %s230, 2
        %s232 = scalar_lea.vmem [#allocation8], %s231
        %s233 = sadd.s32 %s28, %s29
        %s234 = smul.u32 2, %s233
        %s235 = sadd.s32 %s28, %s29
        %s236 = smul.u32 2, %s235
        %p237 = scmp.eq.s32.totalorder %s29, 0
        // Predicated region
        $region37: #{tpu_custom_call.1} parent=27 // pred_check
          %p238 = pneg %p237
        $region38: #{tpu_custom_call.1} parent=27 // pred_check_branch
          %240 = sbr.rel (%p238) target = $region40
        $region39: #{tpu_custom_call.1} parent=27 // pred_region
          %v241 = vlaneseq
          %vm242 = vcmp.ge.s32.totalorder %v241, 0
          %vm243 = vcmp.lt.s32.totalorder %v241, 256
          %vm244 = vmand %vm242, %vm243
          %245 = vst.msk [vmem:[%s232] sm:$0x3] %vm244, 0.0
          %v246 = vlaneseq
          %v247 = vshrl.u32 %v246, 7
          %v249 = vunpack.c.l.s4 839922192
          %v250 = vunpack.c.0.s8 %v249
          %v251 = vlaneseq
          %v252 = vshrl.u32 %v251, 7
          %v253 = vsub.s32 %v250, %v252
          %v254 = vrot.slane %v247, %v253
          %255 = vst [vmem:[#allocation2] sm:$0xff] %v254
        $region40: #{tpu_custom_call.1} parent=27 // pred_fallthru
          _
        %v256 = vld [vmem:[%s198] sm:$0xff]
        %v257 = vld [vmem:[%s207] sm:$0x3]
        %v258 = vld [vmem:[#allocation2] sm:$0xff]
        %v260 = vcombine.high %v256, %v256
        %vm262 = vcmask 1043456
        %v263 = vsel %vm262, %v256, -inf
        %v264 = vrot.slane %v263, 4
        %v265 = vmax.f32 %v263, %v264
        %v266 = vrot.slane %v265, 2
        %v267 = vmax.f32 %v265, %v266
        %v268 = vrot.slane %v267, 1
        %v269 = vmax.f32 %v267, %v268
        %v270 = vsel %vm262, %v260, -inf
        %v271 = vrot.slane %v270, 4
        %v272 = vmax.f32 %v270, %v271
        %v273 = vrot.slane %v272, 2
        %v274 = vmax.f32 %v272, %v273
        %v275 = vrot.slane %v274, 1
        %v276 = vmax.f32 %v274, %v275
        %v277 = vlaneseq
        %v278 = vshrl.u32 %v277, 7
        %v279 = vsub.s32 0, %v278
        %v280 = vrot.slane %v257, %v279
        %v281 = vlaneseq
        %v282 = vshrl.u32 %v281, 7
        %v283 = vsub.s32 1, %v282
        %v284 = vrot.slane %v257, %v283
        %v285 = vcombine.low %v280, %v284
        %vm286 = vcmp.eq.s32.totalorder %v258, %v285
        %v287 = vsel %vm286, %v256, 0.0
        %v289 = vcombine.high %v287, %v287
        %v291 = vsel %vm262, %v287, 0.0
        %v292 = vrot.slane %v291, 4
        %v293 = vadd.f32 %v291, %v292
        %v294 = vrot.slane %v293, 2
        %v295 = vadd.f32 %v293, %v294
        %v296 = vrot.slane %v295, 1
        %v297 = vadd.f32 %v295, %v296
        %v298 = vsel %vm262, %v289, 0.0
        %v299 = vrot.slane %v298, 4
        %v300 = vadd.f32 %v298, %v299
        %v301 = vrot.slane %v300, 2
        %v302 = vadd.f32 %v300, %v301
        %v303 = vrot.slane %v302, 1
        %v304 = vadd.f32 %v302, %v303
        %v307 = vcombine.low %v269, %v276
        %v309 = vsub.f32 %v256, %v307
        %v310 = vmul.f32 %v309, 1.442695
        %v311 = vpow.pop %v310
        %v313 = vcombine.high %v311, %v311
        %v315 = vsel %vm262, %v311, 0.0
        %v316 = vrot.slane %v315, 4
        %v317 = vadd.f32 %v315, %v316
        %v318 = vrot.slane %v317, 2
        %v319 = vadd.f32 %v317, %v318
        %v320 = vrot.slane %v319, 1
        %v321 = vadd.f32 %v319, %v320
        %v322 = vsel %vm262, %v313, 0.0
        %v323 = vrot.slane %v322, 4
        %v324 = vadd.f32 %v322, %v323
        %v325 = vrot.slane %v324, 2
        %v326 = vadd.f32 %v324, %v325
        %v327 = vrot.slane %v326, 1
        %v328 = vadd.f32 %v326, %v327
        %vm329 = vcmp.ne.s32.totalorder %v257, 255
        %v330 = vlog2.pop %v321
        %v331 = vmul.f32 %v330, 0.6931472
        %v332 = vlog2.pop %v328
        %v333 = vmul.f32 %v332, 0.6931472
        %v334 = vadd.f32 %v331, %v269
        %v335 = vadd.f32 %v333, %v276
        %v336 = vsub.f32 %v334, %v297
        %v337 = vsub.f32 %v335, %v304
        %v340 = vcombine.low %v336, %v337
        %v342 = vunpack.c.l.s4 1966171168
        %v343 = vunpack.c.0.s8 %v342
        %v344 = vlaneseq
        %v345 = vshrl.u32 %v344, 7
        %v346 = vsub.s32 %v343, %v345
        %v347 = vrot.slane %v340, %v346
        %v349 = vunpack.c.l.s4 1966171168
        %v350 = vunpack.c.0.s8 %v349
        %v351 = vlaneseq
        %v352 = vshrl.u32 %v351, 7
        %v353 = vsub.s32 %v350, %v352
        %v354 = vrot.slane %v347, %v353
        %v356 = vsel %vm329, %v354, 0.0
        %v357 = vld [vmem:[%s232] sm:$0x3]
        %v358 = vadd.f32 %v357, %v356
        %v359 = vlaneseq
        %vm360 = vcmp.ge.s32.totalorder %v359, 0
        %vm361 = vcmp.lt.s32.totalorder %v359, 256
        %vm362 = vmand %vm360, %vm361
        %363 = vst.msk [vmem:[%s232] sm:$0x3] %vm362, %v358
        %s364 = sand.u32 %s111, 1
        %s365 = scalar_lea.sflag [#allocation5], %s364
        %s366 = sand.u32 %s111, 1
        %s367 = smul.addr %s366, 2
        %s368 = scalar_lea.vmem [#allocation8], %s367
        // Predicated region
        $region41: #{tpu_custom_call.1} parent=27 // pred_check
          %p369 = pneg %p121
        $region42: #{tpu_custom_call.1} parent=27 // pred_check_branch
          %371 = sbr.rel (%p369) target = $region44
        $region43: #{tpu_custom_call.1} parent=27 // pred_region
          %s373 = ssub.s32 32, 32
          %374 = vsyncadd %s365, %s373
          %s375 = smul.addr %s28, 2
          %s376 = smul.addr %s27, 2
          %s377 = sadd.s32 %s375, %s376
          %s378 = smul.addr %s377, 16
          %s379 = scalar_lea.hbm %s2, %s378
          %s381 = sshll.u32 %s368, 4
          %s382 = int_to_ptr.vmem [resolvable:$true] %s381
          %384 = dma.vmem_to_hbm [thread:$0]  %s382, 32, %s379, %s365
        $region44: #{tpu_custom_call.1} parent=27 // pred_fallthru
          _
      $region28: #{tpu_custom_call.1} parent=5 // pred_fallthru
        _
      %p385 = scmp.le.s32.totalorder 2, %s17
      // Predicated region
      $region45: #{tpu_custom_call.1} parent=5 // pred_check
        %p386 = pneg %p385
      $region46: #{tpu_custom_call.1} parent=5 // pred_check_branch
        %388 = sbr.rel (%p386) target = $region48
      $region47: #{tpu_custom_call.1} parent=5 // pred_region
        %s389 = ssub.s32 %s17, 2
        // Predicated region
        $region49: #{tpu_custom_call.1} parent=47 // pred_check
          %p390 = pneg %p127
        $region50: #{tpu_custom_call.1} parent=47 // pred_check_branch
          %392 = sbr.rel (%p390) target = $region52
        $region51: #{tpu_custom_call.1} parent=47 // pred_region
          %s393 = sand.u32 %s112, 1
          %s394 = scalar_lea.sflag [#allocation5], %s393
          %s395 = sand.u32 %s112, 1
          %s396 = smul.addr %s395, 2
          %s397 = scalar_lea.vmem [#allocation8], %s396
          %398 = dma.done %s394, 32
        $region52: #{tpu_custom_call.1} parent=47 // pred_fallthru
          _
      $region48: #{tpu_custom_call.1} parent=5 // pred_fallthru
        _
    $region6: #{tpu_custom_call.1} parent=1 // loop_footer
      %s21 = sadd.s32 1, %s17
    $region7: #{tpu_custom_call.1} parent=1 // loop_footer_branch
      %16 = sbr.rel target = $region3
    $region8: #{tpu_custom_call.1} parent=1 // loop_exit
      _
    %399 = vsyncpa [#allocation4], 1
    %s400 = scalar_lea.sflag [#allocation4], 1
    %401 = vsyncpa %s400, 1
    %402 = vsyncpa [#allocation7], 1
    %s403 = scalar_lea.sflag [#allocation7], 1
    %404 = vsyncpa %s403, 1
    %405 = vsyncpa [#allocation5], 1
    %s406 = scalar_lea.sflag [#allocation5], 1
    %407 = vsyncpa %s406, 1

</llo_original>
